<compile_context>
chip_gen: v6e
topology: v6e:2x2x1
jax: 0.10.0
libtpu: 0.0.40
codegen_flags: <defaults>
</compile_context>

<pallas_src>
import numpy as np
import jax
import jax.numpy as jnp
from jax import lax
from jax.experimental import pallas as pl
from jax.experimental.pallas import tpu as pltpu


def _matmul_bias_gelu_kernel(a_ref, w_ref, b_ref, o_ref):
    # a_ref: (M, K)         bf16 im2col patches, one row per output voxel
    # w_ref: (Cout_pad, K)  bf16 conv weights, K ordered (c, kd, kh, kw)
    # b_ref: (Cout_pad, 1)  f32 conv bias
    # o_ref: (Cout, M)      f32, already output-channel-major
    #
    # out[n, m] = sum_k w[n, k] * a[m, k]  — trans-B contraction, the same
    # pattern as the q @ k.T step of flash attention.
    v1 = lax.dot_general(
        w_ref[...], a_ref[...],
        dimension_numbers=(((1,), (1,)), ((), ())),
        preferred_element_type=jnp.float32,
    ) + b_ref[...]
    # tanh-GELU epilogue exactly as in the PyTorch forward, kept in f32.
    v2 = v1 * 0.5
    v3 = v1 * v1
    v4 = v3 * v1
    v5 = v4 * 0.044715
    v6 = v1 + v5
    v7 = v6 * 0.7978845608028654
    v8 = jnp.tanh(v7)
    v9 = v8 + 1.0
    v10 = v2 * v9
    o_ref[...] = v10[: o_ref.shape[0], :]


def make_conv3d_gelu(weight, bias, x_shape, *, stride=20, padding=1):
    """Build a jitted forward for fixed weights / fixed input shape.

    weight: (Cout, Cin, kd, kh, kw); bias: (Cout,); x_shape: (1, Cin, D, H, W)
    """
    N, Cin, D, H, W = x_shape
    Cout, Cin_w, kd, kh, kw = weight.shape
    assert N == 1 and Cin_w == Cin, "kernel assumes batch 1"

    Dout = (D + 2 * padding - kd) // stride + 1
    Hout = (H + 2 * padding - kh) // stride + 1
    Wout = (W + 2 * padding - kw) // stride + 1
    M = Dout * Hout * Wout                      # 4 output voxels
    K = Cin * kd * kh * kw                      # 640 patch features

    # Pad Cout to a multiple of 16 (bf16 sublane packing) for the weight rows.
    Cout_pad = -(-Cout // 16) * 16

    # ---- one-time prepack (numpy; closed over by jit => no per-call cost) ----
    w_np = np.zeros((Cout_pad, K), np.float32)
    w_np[:Cout, :] = np.asarray(weight, np.float32).reshape(Cout, K)
    b_np = np.zeros((Cout_pad, 1), np.float32)
    b_np[:Cout, 0] = np.asarray(bias, np.float32)
    w_packed = jnp.asarray(w_np, dtype=jnp.bfloat16)    # (Cout_pad, K) bf16
    b_packed = jnp.asarray(b_np)                         # (Cout_pad, 1) f32

    cost = pl.CostEstimate(
        flops=2 * Cout_pad * K * M,
        transcendentals=Cout_pad * M,
        bytes_accessed=(M * K * 2) + (Cout_pad * K * 2)
        + (Cout_pad * 4) + (Cout * M * 4),
    )

    fused = pl.pallas_call(
        _matmul_bias_gelu_kernel,
        out_shape=jax.ShapeDtypeStruct((Cout, M), jnp.float32),
        in_specs=[
            pl.BlockSpec(memory_space=pltpu.MemorySpace.VMEM),
            pl.BlockSpec(memory_space=pltpu.MemorySpace.VMEM),
            pl.BlockSpec(memory_space=pltpu.MemorySpace.VMEM),
        ],
        out_specs=pl.BlockSpec(memory_space=pltpu.MemorySpace.VMEM),
        cost_estimate=cost,
    )

    @jax.jit
    def run(x):
        # Patch extraction: pad + static window slices + stack + bf16 cast.
        # All pure layout/index math -> one small XLA fusion (no conv kernel,
        # no HIGHEST-precision multi-pass, no zero-fill scatter).
        x0 = x.reshape(Cin, D, H, W)
        xp = jnp.pad(x0, ((0, 0),
                          (padding, padding),
                          (padding, padding),
                          (padding, padding)))
        rows = []
        for do in range(Dout):
            for ho in range(Hout):
                for wo in range(Wout):
                    d0, h0, w0 = do * stride, ho * stride, wo * stride
                    win = lax.slice(xp, (0, d0, h0, w0),
                                    (Cin, d0 + kd, h0 + kh, w0 + kw))
                    rows.append(win.reshape(K))    # (c, kd, kh, kw) order
        a = jnp.stack(rows, axis=0).astype(jnp.bfloat16)       # (M, K) bf16

        out = fused(a, w_packed, b_packed)                      # (Cout, M) f32
        # Rows of `a` were built in (do, ho, wo) row-major order, so this
        # reshape is a free metadata op (no transpose, no copy kernel).
        return out.reshape(1, Cout, Dout, Hout, Wout)

    return run


def _reference(x, weight, bias, *, stride=20, padding=1):
    v1 = lax.conv_general_dilated(
        x, weight,
        window_strides=(stride, stride, stride),
        padding=[(padding, padding)] * 3,
        dimension_numbers=("NCDHW", "OIDHW", "NCDHW"),
        precision=lax.Precision.HIGHEST,
    ) + bias.reshape(1, -1, 1, 1, 1)
    v2 = v1 * 0.5
    v5 = (v1 * v1 * v1) * 0.044715
    v7 = (v1 + v5) * 0.7978845608028654
    return v2 * (jnp.tanh(v7) + 1.0)


if __name__ == "__main__":
    key = jax.random.PRNGKey(0)
    k1, k2, k3 = jax.random.split(key, 3)

    # Shapes implied by the module: input (1, 10, 32, 30, 10),
    # Conv3d(10, 9, kernel=4, stride=20, padding=1).
    x = jax.random.normal(k1, (1, 10, 32, 30, 10), jnp.float32)
    fan_in = 10 * 4 * 4 * 4
    bound = 1.0 / (fan_in ** 0.5)
    weight = jax.random.uniform(k2, (9, 10, 4, 4, 4), jnp.float32, -bound, bound)
    bias = jax.random.uniform(k3, (9,), jnp.float32, -bound, bound)

    conv3d_gelu = make_conv3d_gelu(weight, bias, x.shape, stride=20, padding=1)

    out = jax.block_until_ready(conv3d_gelu(x))
    ref = jax.block_until_ready(_reference(x, weight, bias))

    assert out.shape == ref.shape == (1, 9, 2, 2, 1), out.shape
    # bf16 matmul operands (native MXU path) with f32 accumulation/epilogue:
    # expected error ~1e-3; relaxed tolerance gives a wide margin.
    assert jnp.allclose(out, ref, rtol=1e-2, atol=1e-2), "mismatch vs reference"

    print("KERNEL_OK")
</pallas_src>

<mosaic_0001>
module attributes {stable_mosaic.version = 11 : i64} {
  func.func @_matmul_bias_gelu_kernel(%arg0: memref<4x640xbf16, #tpu.memory_space<vmem>>, %arg1: memref<16x640xbf16, #tpu.memory_space<vmem>>, %arg2: memref<16x1xf32, #tpu.memory_space<vmem>>, %arg3: memref<9x4xf32, #tpu.memory_space<vmem>>) attributes {dimension_semantics = [], scalar_prefetch = 0 : i64, scratch_operands = 0 : i64, tpu.core_type = #tpu.core_type<tc>} {
    %c0 = arith.constant 0 : index
    %c0_0 = arith.constant 0 : index
    %0 = vector.load %arg1[%c0, %c0_0] : memref<16x640xbf16, #tpu.memory_space<vmem>>, vector<16x640xbf16>
    %c0_1 = arith.constant 0 : index
    %c0_2 = arith.constant 0 : index
    %1 = vector.load %arg0[%c0_1, %c0_2] : memref<4x640xbf16, #tpu.memory_space<vmem>>, vector<4x640xbf16>
    %cst = arith.constant dense<0.000000e+00> : vector<16x4xf32>
    %2 = tpu.matmul %0, %1, %cst {dimension_numbers = #tpu.dot_dimension_numbers<[1], [1], [0], [0], [0, 0, 1, 0], [], []>} : vector<16x640xbf16>, vector<4x640xbf16>, vector<16x4xf32> -> vector<16x4xf32>
    %c0_3 = arith.constant 0 : index
    %c0_4 = arith.constant 0 : index
    %3 = vector.load %arg2[%c0_3, %c0_4] : memref<16x1xf32, #tpu.memory_space<vmem>>, vector<16x1xf32>
    %4 = vector.broadcast %3 : vector<16x1xf32> to vector<16x4xf32>
    %5 = arith.addf %2, %4 : vector<16x4xf32>
    %cst_5 = arith.constant 5.000000e-01 : f32
    %6 = vector.broadcast %cst_5 : f32 to vector<16x4xf32>
    %7 = arith.mulf %5, %6 : vector<16x4xf32>
    %8 = arith.mulf %5, %5 : vector<16x4xf32>
    %9 = arith.mulf %8, %5 : vector<16x4xf32>
    %cst_6 = arith.constant 4.471500e-02 : f32
    %10 = vector.broadcast %cst_6 : f32 to vector<16x4xf32>
    %11 = arith.mulf %9, %10 : vector<16x4xf32>
    %12 = arith.addf %5, %11 : vector<16x4xf32>
    %cst_7 = arith.constant 0.797884583 : f32
    %13 = vector.broadcast %cst_7 : f32 to vector<16x4xf32>
    %14 = arith.mulf %12, %13 : vector<16x4xf32>
    %15 = math.tanh %14 : vector<16x4xf32>
    %cst_8 = arith.constant 1.000000e+00 : f32
    %16 = vector.broadcast %cst_8 : f32 to vector<16x4xf32>
    %17 = arith.addf %15, %16 : vector<16x4xf32>
    %18 = arith.mulf %7, %17 : vector<16x4xf32>
    %19 = vector.extract_strided_slice %18 {offsets = [0, 0], sizes = [9, 4], strides = [1, 1]} : vector<16x4xf32> to vector<9x4xf32>
    %c0_9 = arith.constant 0 : index
    %c0_10 = arith.constant 0 : index
    %20 = vector.load %arg3[%c0_9, %c0_10] : memref<9x4xf32, #tpu.memory_space<vmem>>, vector<9x4xf32>
    tpu.vector_store %arg3[%c0_9, %c0_10], %19 {strides = array<i32>} : memref<9x4xf32, #tpu.memory_space<vmem>>, vector<9x4xf32>,
    return
  }
}

</mosaic_0001>

<llo_original>
// kernel: run.1
$region0: #{run.1}
  #allocation0 [shape = 'u32[]', space=smem, size = 0x4, offset = 0x4, fixed_abs, tag = 'smem constant byte address 0x4 - core index']
  #allocation1 [shape = 'u32[144,128]{1,0:T(1,128)}', space=vmem, size = 0x12000, scoped, tag = 'internal scratch']
  %s0 = inlined_call_operand.vmem [shape: bf16[4,640], index: 0, kind: input, shape index: {}]
  %s1 = inlined_call_operand.vmem [shape: bf16[16,640], index: 1, kind: input, shape index: {}]
  %s2 = inlined_call_operand.vmem [shape: f32[16,1], index: 2, kind: input, shape index: {}]
  %s3 = inlined_call_operand.vmem [shape: f32[9,4], index: 3, kind: output, shape index: {}]
  %s4 = sld [smem:[#allocation0]]
  $region22: #{run.1} parent=0
    _
  %s6 = ssub.s32 1, %s4
  %s7 = scalar_select 0, %s6, %s4
  // Predicated region
  $region2: #{run.1} parent=0 // pred_check
    _
  $region3: #{run.1} parent=0 // pred_check_branch
    %9 = sbr.rel (0) target = $region5
  $region4: #{run.1} parent=0 // pred_region
    _
  $region5: #{run.1} parent=0 // pred_fallthru
    _
  // Predicated region
  $region6: #{run.1} parent=0 // pred_check
    _
  $region7: #{run.1} parent=0 // pred_check_branch
    %11 = sbr.rel (0) target = $region9
  $region8: #{run.1} parent=0 // pred_region
    _
  $region9: #{run.1} parent=0 // pred_fallthru
    _
  // Predicated region
  $region10: #{run.1} parent=0 // pred_check
    _
  $region11: #{run.1} parent=0 // pred_check_branch
    %13 = sbr.rel (0) target = $region13
  $region12: #{run.1} parent=0 // pred_region
    _
  $region13: #{run.1} parent=0 // pred_fallthru
    _
  %v15 = vld [vmem:[%s1] sm:$0xff]
  %v16 = vld [vmem:[%s1 + $0x8] sm:$0xff]
  %v17 = vld [vmem:[%s1 + $0x10] sm:$0xf]
  %v18 = vld [vmem:[%s1 + $0x14] sm:$0xff]
  %v19 = vld [vmem:[%s1 + $0x1c] sm:$0xff]
  %v20 = vld [vmem:[%s1 + $0x24] sm:$0xf]
  %v21 = vld [vmem:[%s0] sm:$0xff]
  %v22 = vld [vmem:[%s0 + $0x8] sm:$0x3]
  %v23 = vld [vmem:[%s2] sm:$0xff]
  %v24 = vld [vmem:[%s2 + $0x8] sm:$0xff]
  %26 = vset.pattern.permute.xlu0 0
  %27 = vperm.xlu0 %26, %v23
  %v28 = vpop.permute.xlu0 %27
  %31 = vset.pattern.permute.xlu0 0
  %32 = vperm.xlu0 %31, %v24
  %v33 = vpop.permute.xlu0 %32
  %v41 = vunpack.c.l.b16 %v15
  %v42 = vunpack.c.h.b16 %v15
  %v43 = vunpack.c.l.b16 %v16
  %v44 = vunpack.c.h.b16 %v16
  %v45 = vunpack.c.l.b16 %v17
  %v46 = vunpack.c.l.b16 %v18
  %v47 = vunpack.c.h.b16 %v18
  %v48 = vunpack.c.l.b16 %v19
  %v49 = vunpack.c.h.b16 %v19
  %v50 = vunpack.c.l.b16 %v20
  %v51 = vpack.c.b16 %v46, %v41
  %v52 = vpack.c.b16 %v47, %v42
  %v53 = vpack.c.b16 %v48, %v43
  %v54 = vpack.c.b16 %v49, %v44
  %v55 = vpack.c.b16 %v50, %v45
  %v63 = vcombine.high %v21, %v21
  %v65 = vunpack.c.l.s4 1983009808
  %v66 = vunpack.c.0.s8 %v65
  %v67 = vlaneseq
  %v68 = vshrl.u32 %v67, 7
  %v69 = vsub.s32 %v66, %v68
  %v70 = vrot.slane %v21, %v69
  %v72 = vunpack.c.l.s4 1983009808
  %v73 = vunpack.c.0.s8 %v72
  %v74 = vlaneseq
  %v75 = vshrl.u32 %v74, 7
  %v76 = vsub.s32 %v73, %v75
  %v77 = vrot.slane %v63, %v76
  %v78 = vcombine.high %v70, %v70
  %v79 = vcombine.high %v77, %v77
  %v81 = vunpack.c.l.s4 1983009808
  %v82 = vunpack.c.0.s8 %v81
  %v83 = vlaneseq
  %v84 = vshrl.u32 %v83, 7
  %v85 = vsub.s32 %v82, %v84
  %v86 = vrot.slane %v22, %v85
  %92 = vmatprep.subr.bf16.mxu0 0
  %93 = vmatpush1.bf16.xpose.msra.mxu0 0
  %94 = vmatprep.subr.bf16.mxu0 0
  %95 = vmatpush1.bf16.xpose.msra.mxu0 0
  %96 = vmatprep.subr.bf16.mxu0 0
  %97 = vmatpush1.bf16.xpose.msra.mxu0 0
  %98 = vmatprep.subr.bf16.mxu0 0
  %99 = vmatpush1.bf16.xpose.msra.mxu0 0
  %100 = vmatprep.subr.bf16.mxu0 0
  %101 = vmatpush1.bf16.xpose.msra.mxu0 0
  %102 = vmatprep.subr.bf16.mxu0 0
  %103 = vmatpush1.bf16.xpose.msra.mxu0 0
  %104 = vmatprep.subr.bf16.mxu0 0
  %105 = vmatpush1.bf16.xpose.msra.mxu0 0
  %106 = vmatprep.subr.bf16.mxu0 %v78
  %107 = vmatpush1.bf16.xpose.msra.mxu0 %v70
  %108 = vmatprep.subr.bf16.mxu0 0
  %109 = vmatpush2.bf16.xpose.msra.mxu0 0
  %110 = vmatprep.subr.bf16.mxu0 0
  %111 = vmatpush2.bf16.xpose.msra.mxu0 0
  %112 = vmatprep.subr.bf16.mxu0 0
  %113 = vmatpush2.bf16.xpose.msra.mxu0 0
  %114 = vmatprep.subr.bf16.mxu0 0
  %115 = vmatpush2.bf16.xpose.msra.mxu0 0
  %116 = vmatprep.subr.bf16.mxu0 0
  %117 = vmatpush2.bf16.xpose.msra.mxu0 0
  %118 = vmatprep.subr.bf16.mxu0 0
  %119 = vmatpush2.bf16.xpose.msra.mxu0 0
  %120 = vmatprep.subr.bf16.mxu0 0
  %121 = vmatpush2.bf16.xpose.msra.mxu0 0
  %122 = vmatprep.subr.bf16.mxu0 0
  %123 = vmatpush2.bf16.xpose.msra.mxu0 0
  %124 = vmatprep.mubr.bf16.mxu0 %v52
  %125 = vmatmul.mubr.bf16.gmra.mxu0 %v51
  %v126 = vpop.f32.mrf.mxu0
  %v127 = vadd.f32 %v28, %v126
  %v128 = vpop.f32.mrf.mxu0
  %v129 = vpop.f32.mrf.mxu0
  %v130 = vadd.f32 %v33, %v129
  %v131 = vpop.f32.mrf.mxu0
  %132 = vdwg.mxu0
  %133 = vmatprep.subr.bf16.mxu0 0
  %134 = vmatpush1.bf16.xpose.msra.mxu0 0
  %135 = vmatprep.subr.bf16.mxu0 0
  %136 = vmatpush1.bf16.xpose.msra.mxu0 0
  %137 = vmatprep.subr.bf16.mxu0 0
  %138 = vmatpush1.bf16.xpose.msra.mxu0 0
  %139 = vmatprep.subr.bf16.mxu0 0
  %140 = vmatpush1.bf16.xpose.msra.mxu0 0
  %141 = vmatprep.subr.bf16.mxu0 0
  %142 = vmatpush1.bf16.xpose.msra.mxu0 0
  %143 = vmatprep.subr.bf16.mxu0 0
  %144 = vmatpush1.bf16.xpose.msra.mxu0 0
  %145 = vmatprep.subr.bf16.mxu0 0
  %146 = vmatpush1.bf16.xpose.msra.mxu0 0
  %147 = vmatprep.subr.bf16.mxu0 %v79
  %148 = vmatpush1.bf16.xpose.msra.mxu0 %v77
  %149 = vmatprep.subr.bf16.mxu0 0
  %150 = vmatpush2.bf16.xpose.msra.mxu0 0
  %151 = vmatprep.subr.bf16.mxu0 0
  %152 = vmatpush2.bf16.xpose.msra.mxu0 0
  %153 = vmatprep.subr.bf16.mxu0 0
  %154 = vmatpush2.bf16.xpose.msra.mxu0 0
  %155 = vmatprep.subr.bf16.mxu0 0
  %156 = vmatpush2.bf16.xpose.msra.mxu0 0
  %157 = vmatprep.subr.bf16.mxu0 0
  %158 = vmatpush2.bf16.xpose.msra.mxu0 0
  %159 = vmatprep.subr.bf16.mxu0 0
  %160 = vmatpush2.bf16.xpose.msra.mxu0 0
  %161 = vmatprep.subr.bf16.mxu0 0
  %162 = vmatpush2.bf16.xpose.msra.mxu0 0
  %163 = vmatprep.subr.bf16.mxu0 0
  %164 = vmatpush2.bf16.xpose.msra.mxu0 0
  %165 = vmatprep.mubr.bf16.mxu0 %v54
  %166 = vmatmul.mubr.bf16.gmra.mxu0 %v53
  %v167 = vpop.f32.mrf.mxu0
  %v168 = vadd.f32 %v127, %v167
  %v169 = vpop.f32.mrf.mxu0
  %v170 = vpop.f32.mrf.mxu0
  %v171 = vadd.f32 %v130, %v170
  %v172 = vpop.f32.mrf.mxu0
  %173 = vdwg.mxu0
  %174 = vmatprep.subr.bf16.mxu0 0
  %175 = vmatpush1.bf16.xpose.msra.mxu0 0
  %176 = vmatprep.subr.bf16.mxu0 0
  %177 = vmatpush1.bf16.xpose.msra.mxu0 0
  %178 = vmatprep.subr.bf16.mxu0 0
  %179 = vmatpush1.bf16.xpose.msra.mxu0 0
  %180 = vmatprep.subr.bf16.mxu0 0
  %181 = vmatpush1.bf16.xpose.msra.mxu0 0
  %182 = vmatprep.subr.bf16.mxu0 0
  %183 = vmatpush1.bf16.xpose.msra.mxu0 0
  %184 = vmatprep.subr.bf16.mxu0 0
  %185 = vmatpush1.bf16.xpose.msra.mxu0 0
  %186 = vmatprep.subr.bf16.mxu0 0
  %187 = vmatpush1.bf16.xpose.msra.mxu0 0
  %188 = vmatprep.subr.bf16.mxu0 0
  %189 = vmatpush1.bf16.xpose.msra.mxu0 %v86
  %190 = vmatprep.subr.bf16.mxu0 0
  %191 = vmatpush2.bf16.xpose.msra.mxu0 0
  %192 = vmatprep.subr.bf16.mxu0 0
  %193 = vmatpush2.bf16.xpose.msra.mxu0 0
  %194 = vmatprep.subr.bf16.mxu0 0
  %195 = vmatpush2.bf16.xpose.msra.mxu0 0
  %196 = vmatprep.subr.bf16.mxu0 0
  %197 = vmatpush2.bf16.xpose.msra.mxu0 0
  %198 = vmatprep.subr.bf16.mxu0 0
  %199 = vmatpush2.bf16.xpose.msra.mxu0 0
  %200 = vmatprep.subr.bf16.mxu0 0
  %201 = vmatpush2.bf16.xpose.msra.mxu0 0
  %202 = vmatprep.subr.bf16.mxu0 0
  %203 = vmatpush2.bf16.xpose.msra.mxu0 0
  %204 = vmatprep.subr.bf16.mxu0 0
  %205 = vmatpush2.bf16.xpose.msra.mxu0 0
  %206 = vmatprep.mubr.bf16.mxu0 0
  %207 = vmatmul.mubr.bf16.gmra.mxu0 %v55
  %v208 = vpop.f32.mrf.mxu0
  %v209 = vadd.f32 %v168, %v208
  %v210 = vpop.f32.mrf.mxu0
  %v211 = vpop.f32.mrf.mxu0
  %v212 = vadd.f32 %v171, %v211
  %v213 = vpop.f32.mrf.mxu0
  %214 = vdwg.mxu0
  %v215 = vmul.f32 %v209, 0.5
  %v216 = vmul.f32 %v212, 0.5
  %v217 = vmul.f32 %v209, %v209
  %v218 = vmul.f32 %v212, %v212
  %v219 = vmul.f32 %v217, %v209
  %v220 = vmul.f32 %v218, %v212
  %v221 = vmul.f32 %v219, 0.044715
  %v222 = vmul.f32 %v220, 0.044715
  %v223 = vadd.f32 %v209, %v221
  %v224 = vadd.f32 %v212, %v222
  %v225 = vmul.f32 %v223, 0.7978846
  %v226 = vmul.f32 %v224, 0.7978846
  %v227 = vtanh.pop %v225
  %v228 = vtanh.pop %v226
  %v229 = vadd.f32 %v227, 1.0
  %v230 = vadd.f32 %v228, 1.0
  %v231 = vmul.f32 %v215, %v229
  %v232 = vmul.f32 %v216, %v230
  %vm233 = vcmask 31744
  %234 = vst.msk [vmem:[%s3] sm:$0xff] %vm233, %v231
  %vm235 = vcmask 24576
  %236 = vst.msk [vmem:[%s3 + $0x8] sm:$0x1] %vm235, %v232
  // Predicated region
  $region14: #{run.1} parent=0 // pred_check
    _
  $region15: #{run.1} parent=0 // pred_check_branch
    %238 = sbr.rel (0) target = $region17
  $region16: #{run.1} parent=0 // pred_region
    _
  $region17: #{run.1} parent=0 // pred_fallthru
    _
  // Predicated region
  $region18: #{run.1} parent=0 // pred_check
    _
  $region19: #{run.1} parent=0 // pred_check_branch
    %240 = sbr.rel (0) target = $region21
  $region20: #{run.1} parent=0 // pred_region
    _
  $region21: #{run.1} parent=0 // pred_fallthru
    _

</llo_original>
